<compile_context>
chip_gen: v6e
topology: v6e:2x2x1
jax: 0.10.0
libtpu: 0.0.40
codegen_flags: <defaults>
</compile_context>

<pallas_src>
import math
import numpy as np
import jax
import jax.numpy as jnp
from jax import lax
from jax.experimental import pallas as pl
from jax.experimental.pallas import tpu as pltpu


# --------------------------------------------------------------------------- #
# Pallas kernels
# --------------------------------------------------------------------------- #
def _stage_bins_kernel(x_ref, pt_ref, w1_ref, mask_ref, b1m_ref, bins_ref, acc_ref):
    """Adaptive pooling (all stages fused) + 1x1 conv (BN folded) + ReLU.

    Grid: (N, HW_tiles); the HW axis is the pooling reduction ('arbitrary').
      x_ref   : (Cin, t_hw)    input tile, channel-major (lane dim = HW tile)
      pt_ref  : (t_hw, B2tot)  combined pool matrix tile (columns grouped by stage)
      w1_ref  : (S*Cs, Cin)    stacked 1x1 conv weights, BN scale folded in
      mask_ref: (S*Cs, B2tot)  block-diagonal stage mask (f32, {0,1})
      b1m_ref : (S*Cs, B2tot)  folded BN bias, pre-masked (f32)
      bins_ref: (S*Cs, B2tot)  output stage bins (masked + ReLU'd)
      acc_ref : (Cin, B2tot)   f32 pooled accumulator (scratch)
    """
    j = pl.program_id(1)

    @pl.when(j == 0)
    def _init():
        acc_ref[...] = jnp.zeros_like(acc_ref)

    # One wide MXU pass pools x for ALL stages at once.
    acc_ref[...] += jnp.dot(x_ref[...], pt_ref[...],
                            preferred_element_type=jnp.float32)

    @pl.when(j == pl.num_programs(1) - 1)
    def _finalize():
        pooled = acc_ref[...].astype(w1_ref.dtype)
        z = jnp.dot(w1_ref[...], pooled, preferred_element_type=jnp.float32)
        # relu(z + b1) restricted to each stage's own pooled columns:
        #   relu(z*mask + b1*mask) == relu(z + b1) * mask   since mask in {0,1}.
        bins_ref[...] = jnp.maximum(z * mask_ref[...] + b1m_ref[...],
                                    0.0).astype(bins_ref.dtype)


def _bottleneck_kernel(cols_ref, w3x_ref, m_ref, ut9_ref, o_ref, acc_ref):
    """3x3 bottleneck conv (BN folded) + ReLU, tiled over HW and K.

    Grid: (N, HW_tiles, K_tiles); the K axis is the reduction ('arbitrary').
      cols_ref: (t_k, t_hw)     im2col tile of the `features` channels (bf16)
      w3x_ref : (Cout, t_k)     3x3 weights for the `features` channels (BN folded)
      m_ref   : (Cout, 9*B2tot+1)  per-image stage-bin mixing matrix (+ bias column)
      ut9_ref : (9*B2tot+1, t_hw)  shifted upsample matrices (+ ones row) -- constant
      o_ref   : (Cout, t_hw)    lane-dense output tile (flattened NCHW)
      acc_ref : (Cout, t_hw)    f32 accumulator (scratch)
    """
    k = pl.program_id(2)

    @pl.when(k == 0)
    def _init():
        # Entire pyramid-stage contribution + folded BN bias in one small matmul;
        # the upsampled maps / concat / their im2col never exist in HBM.
        acc_ref[...] = jnp.dot(m_ref[...], ut9_ref[...],
                               preferred_element_type=jnp.float32)

    acc_ref[...] += jnp.dot(w3x_ref[...], cols_ref[...],
                            preferred_element_type=jnp.float32)

    @pl.when(k == pl.num_programs(2) - 1)
    def _finalize():
        o_ref[...] = jnp.maximum(acc_ref[...], 0.0).astype(o_ref.dtype)


# --------------------------------------------------------------------------- #
# Host-side helpers
# --------------------------------------------------------------------------- #
def _adaptive_pool_matrix_1d(l_in, b):
    """PyTorch AdaptiveAvgPool boundaries: start=floor(i*L/b), end=ceil((i+1)*L/b)."""
    p = np.zeros((b, l_in), np.float32)
    for i in range(b):
        s = (i * l_in) // b
        e = ((i + 1) * l_in + b - 1) // b
        p[i, s:e] = 1.0 / (e - s)
    return p


def _bilinear_matrix_1d(l_out, l_in):
    """F.interpolate(mode='bilinear', align_corners=False) per-axis weights."""
    u = np.zeros((l_out, l_in), np.float32)
    for o in range(l_out):
        src = max((o + 0.5) * l_in / l_out - 0.5, 0.0)
        i0 = min(int(math.floor(src)), l_in - 1)
        i1 = min(i0 + 1, l_in - 1)
        w1 = src - i0
        u[o, i0] += 1.0 - w1
        u[o, i1] += w1
    return u


def _pick_hw_tile(hw, target):
    """Largest multiple of 128 that divides hw and is <= target, else the full hw."""
    if target >= hw:
        return hw
    t = (target // 128) * 128
    while t >= 128:
        if hw % t == 0:
            return t
        t -= 128
    return hw


def _pick_k_tile(k_total, target):
    """K tile (multiple of 128 for lane-aligned weight blocks) and zero-padded K."""
    if target >= k_total:
        return k_total, k_total, 1
    t = max(128, (target // 128) * 128)
    n = -(-k_total // t)          # ceil
    return t, n * t, n


# --------------------------------------------------------------------------- #
# Wrapper: full _PSPModule forward (eval-mode BN)
# --------------------------------------------------------------------------- #
def psp_module_forward(x_nchw, stage_w, stage_gamma, stage_beta, stage_mean, stage_var,
                       bott_w, bott_gamma, bott_beta, bott_mean, bott_var,
                       bin_sizes=(1, 2, 3, 6), eps=1e-5,
                       compute_dtype=jnp.bfloat16, hw_tile=512, k_tile=1024):
    """x_nchw: (N, Cin, H, W).  stage_*: stacked over stages (S, Cs, Cin)/(S, Cs).
    bott_w: (Cout, Cin + S*Cs, 3, 3).  Returns (N, Cout, H, W) in f32."""
    # TODO(synk): training-mode BatchNorm (batch statistics) not implemented; BN is
    #             folded using running stats (eval mode), matching module inference.
    N, Cin, H, W = x_nchw.shape
    HW = H * W
    S = len(bin_sizes)
    Cs = stage_w.shape[1]
    SCs = S * Cs
    Cout = bott_w.shape[0]
    offs = np.concatenate([[0], np.cumsum([b * b for b in bin_sizes])]).astype(int)
    B2tot = int(offs[-1])
    Kx = 9 * Cin
    cdt = compute_dtype

    t_hw = _pick_hw_tile(HW, hw_tile)
    t_k, Kxp, n_k = _pick_k_tile(Kx, k_tile)
    n_hw = HW // t_hw

    # ---- host-built pool / upsample / mask matrices (trace-time constants) ----
    pt_comb = np.zeros((HW, B2tot), np.float32)    # x_cm @ pt_comb -> pooled (all stages)
    ut_comb = np.zeros((B2tot, HW), np.float32)    # bins @ ut_comb -> upsampled maps
    mask_np = np.zeros((SCs, B2tot), np.float32)   # block-diagonal stage ownership
    for kdx, b in enumerate(bin_sizes):
        ph = _adaptive_pool_matrix_1d(H, b)
        pw = _adaptive_pool_matrix_1d(W, b)
        p2 = np.einsum("ih,jw->ijhw", ph, pw).reshape(b * b, HW)
        uh = _bilinear_matrix_1d(H, b)
        uw = _bilinear_matrix_1d(W, b)
        u2 = np.einsum("hi,wj->hwij", uh, uw).reshape(HW, b * b)
        pt_comb[:, offs[kdx]:offs[kdx + 1]] = p2.T
        ut_comb[offs[kdx]:offs[kdx + 1], :] = u2.T
        mask_np[kdx * Cs:(kdx + 1) * Cs, offs[kdx]:offs[kdx + 1]] = 1.0

    # 9 spatially-shifted copies of the upsample matrix (one per 3x3 conv tap, zero
    # where the tap lands in the conv's zero padding) + a ones row for the BN bias.
    ut_pad = np.zeros((B2tot, H + 2, W + 2), np.float32)
    ut_pad[:, 1:-1, 1:-1] = ut_comb.reshape(B2tot, H, W)
    ut9 = np.concatenate(
        [ut_pad[:, dy:dy + H, dx:dx + W].reshape(B2tot, HW)
         for dy in range(3) for dx in range(3)], axis=0)
    ut9 = np.concatenate([ut9, np.ones((1, HW), np.float32)], axis=0)
    K2 = 9 * B2tot + 1

    # ---- fold stage BN (eval) into the stacked 1x1 conv weights ----
    scale_s = stage_gamma / jnp.sqrt(stage_var + eps)                        # (S, Cs)
    w1_all = (stage_w * scale_s[:, :, None]).reshape(SCs, Cin).astype(cdt)
    b1_all = (stage_beta - stage_mean * scale_s).reshape(SCs, 1)             # f32
    mask = jnp.asarray(mask_np)
    b1m = (b1_all * mask).astype(jnp.float32)

    # ---- fold bottleneck BN; split weights into features-part and stage-part ----
    scale_b = bott_gamma / jnp.sqrt(bott_var + eps)                          # (Cout,)
    w3 = bott_w * scale_b[:, None, None, None]                               # (Cout,Ccat,3,3)
    b3 = bott_beta - bott_mean * scale_b                                     # (Cout,)
    w3x = jnp.transpose(w3[:, :Cin], (0, 2, 3, 1)).reshape(Cout, Kx)         # tap-major
    w3x = jnp.pad(w3x, ((0, 0), (0, Kxp - Kx))).astype(cdt)
    w3s9 = jnp.transpose(w3[:, Cin:], (0, 2, 3, 1)).reshape(Cout, 9, SCs)    # (Cout,9,SCs)

    vmem_limit = 48 * 1024 * 1024

    # ---- Pallas call 1: fused pyramid pooling + 1x1 + BN + ReLU -> stage bins ----
    x_cm = x_nchw.reshape(N, Cin, HW).astype(cdt)
    bins = pl.pallas_call(
        _stage_bins_kernel,
        out_shape=jax.ShapeDtypeStruct((N, SCs, B2tot), cdt),
        grid_spec=pltpu.PrefetchScalarGridSpec(
            num_scalar_prefetch=0,
            grid=(N, n_hw),
            in_specs=[
                pl.BlockSpec((None, Cin, t_hw), lambda n, j: (n, 0, j)),
                pl.BlockSpec((t_hw, B2tot), lambda n, j: (j, 0)),
                pl.BlockSpec((SCs, Cin), lambda n, j: (0, 0)),
                pl.BlockSpec((SCs, B2tot), lambda n, j: (0, 0)),
                pl.BlockSpec((SCs, B2tot), lambda n, j: (0, 0)),
            ],
            out_specs=pl.BlockSpec((None, SCs, B2tot), lambda n, j: (n, 0, 0)),
            scratch_shapes=[pltpu.VMEM((Cin, B2tot), jnp.float32)],
        ),
        compiler_params=pltpu.CompilerParams(
            dimension_semantics=("parallel", "arbitrary"),
            vmem_limit_bytes=vmem_limit),
    )(x_cm, jnp.asarray(pt_comb).astype(cdt), w1_all, mask, b1m)

    # ---- tiny mixing of stage bins with the bottleneck's stage weights (+ bias col) ----
    # Mcat[n, o, t, b] = sum_s w3s[o, s, t] * bins[n, s, b]      (tap t = 3*dy + dx)
    mcat = jnp.einsum("ots,nsb->notb", w3s9.astype(jnp.float32),
                      bins.astype(jnp.float32),
                      precision=lax.Precision.HIGHEST).reshape(N, Cout, 9 * B2tot)
    mcat = jnp.concatenate(
        [mcat, jnp.broadcast_to(b3.reshape(1, Cout, 1), (N, Cout, 1))],
        axis=2).astype(cdt)
    ut9_dev = jnp.asarray(ut9).astype(cdt)

    # ---- im2col over the `features` channels only (stage half is never built) ----
    # TODO(synk): at production shapes replace this bf16 HBM im2col with an in-kernel
    #             halo DMA; the pyramid-stage half of the im2col is already gone.
    x_pad = jnp.pad(x_nchw, ((0, 0), (0, 0), (1, 1), (1, 1)))
    cols = jnp.stack([x_pad[:, :, dy:dy + H, dx:dx + W]
                      for dy in range(3) for dx in range(3)], axis=1)
    cols = cols.reshape(N, Kx, HW)
    cols = jnp.pad(cols, ((0, 0), (0, Kxp - Kx), (0, 0))).astype(cdt)

    # ---- Pallas call 2: tiled bottleneck conv + BN + ReLU ----
    out_cm = pl.pallas_call(
        _bottleneck_kernel,
        out_shape=jax.ShapeDtypeStruct((N, Cout, HW), jnp.float32),
        grid_spec=pltpu.PrefetchScalarGridSpec(
            num_scalar_prefetch=0,
            grid=(N, n_hw, n_k),
            in_specs=[
                pl.BlockSpec((None, t_k, t_hw), lambda n, j, k: (n, k, j)),
                pl.BlockSpec((Cout, t_k), lambda n, j, k: (0, k)),
                pl.BlockSpec((None, Cout, K2), lambda n, j, k: (n, 0, 0)),
                pl.BlockSpec((K2, t_hw), lambda n, j, k: (0, j)),
            ],
            out_specs=pl.BlockSpec((None, Cout, t_hw), lambda n, j, k: (n, 0, j)),
            scratch_shapes=[pltpu.VMEM((Cout, t_hw), jnp.float32)],
        ),
        compiler_params=pltpu.CompilerParams(
            dimension_semantics=("parallel", "parallel", "arbitrary"),
            vmem_limit_bytes=vmem_limit),
    )(cols, w3x, mcat, ut9_dev)

    return out_cm.reshape(N, Cout, H, W)   # already NCHW: no transpose needed


# --------------------------------------------------------------------------- #
# Pure-JAX reference for correctness
# --------------------------------------------------------------------------- #
def _reference_forward(x, stage_w, stage_gamma, stage_beta, stage_mean, stage_var,
                       bott_w, bott_gamma, bott_beta, bott_mean, bott_var,
                       bin_sizes=(1, 2, 3, 6), eps=1e-5):
    N, Cin, H, W = x.shape
    pyramids = [x]
    for k, b in enumerate(bin_sizes):
        rows = []
        for i in range(b):
            hs, he = (i * H) // b, ((i + 1) * H + b - 1) // b
            cells = []
            for j in range(b):
                ws, we = (j * W) // b, ((j + 1) * W + b - 1) // b
                cells.append(jnp.mean(x[:, :, hs:he, ws:we], axis=(2, 3)))
            rows.append(jnp.stack(cells, axis=-1))
        pooled = jnp.stack(rows, axis=-2)                                # (N, Cin, b, b)
        y = jnp.einsum("oc,ncij->noij", stage_w[k], pooled,
                       precision=lax.Precision.HIGHEST)
        y = (y - stage_mean[k][None, :, None, None]) / jnp.sqrt(
            stage_var[k][None, :, None, None] + eps)
        y = y * stage_gamma[k][None, :, None, None] + stage_beta[k][None, :, None, None]
        y = jnp.maximum(y, 0.0)

        def src_idx(l_out, l_in):
            d = np.arange(l_out)
            s = np.maximum((d + 0.5) * l_in / l_out - 0.5, 0.0)
            i0 = np.minimum(np.floor(s).astype(np.int64), l_in - 1)
            i1 = np.minimum(i0 + 1, l_in - 1)
            return i0, i1, jnp.asarray((s - i0).astype(np.float32))
        i0h, i1h, wh = src_idx(H, b)
        i0w, i1w, ww = src_idx(W, b)
        yh = (y[:, :, i0h, :] * (1.0 - wh)[None, None, :, None]
              + y[:, :, i1h, :] * wh[None, None, :, None])
        yu = (yh[:, :, :, i0w] * (1.0 - ww)[None, None, None, :]
              + yh[:, :, :, i1w] * ww[None, None, None, :])
        pyramids.append(yu)

    cat = jnp.concatenate(pyramids, axis=1)
    z = lax.conv_general_dilated(cat, bott_w, (1, 1), "SAME",
                                 dimension_numbers=("NCHW", "OIHW", "NCHW"),
                                 precision=lax.Precision.HIGHEST)
    z = (z - bott_mean[None, :, None, None]) / jnp.sqrt(
        bott_var[None, :, None, None] + eps)
    z = z * bott_gamma[None, :, None, None] + bott_beta[None, :, None, None]
    return jnp.maximum(z, 0.0)


# --------------------------------------------------------------------------- #
if __name__ == "__main__":
    N, Cin, H, W = 2, 16, 16, 16
    bin_sizes = (1, 2, 3, 6)
    S = len(bin_sizes)
    Cs = Cin // S                  # per-stage and bottleneck output channels
    Ccat = Cin + S * Cs
    Cout = Cs

    key = jax.random.PRNGKey(0)
    ks = jax.random.split(key, 11)
    x = jax.random.normal(ks[0], (N, Cin, H, W), jnp.float32)

    stage_w = 0.3 * jax.random.normal(ks[1], (S, Cs, Cin), jnp.float32)       # 1x1 convs
    stage_gamma = 1.0 + 0.1 * jax.random.normal(ks[2], (S, Cs), jnp.float32)
    stage_beta = 0.1 * jax.random.normal(ks[3], (S, Cs), jnp.float32)
    stage_mean = 0.05 * jax.random.normal(ks[4], (S, Cs), jnp.float32)
    stage_var = 1.0 + 0.1 * jax.random.uniform(ks[5], (S, Cs), jnp.float32)

    bott_w = 0.1 * jax.random.normal(ks[6], (Cout, Ccat, 3, 3), jnp.float32)  # 3x3 conv
    bott_gamma = 1.0 + 0.1 * jax.random.normal(ks[7], (Cout,), jnp.float32)
    bott_beta = 0.1 * jax.random.normal(ks[8], (Cout,), jnp.float32)
    bott_mean = 0.05 * jax.random.normal(ks[9], (Cout,), jnp.float32)
    bott_var = 1.0 + 0.1 * jax.random.uniform(ks[10], (Cout,), jnp.float32)

    # Small tiles so the toy shape exercises the multi-step HW / K reduction grids.
    out = psp_module_forward(x, stage_w, stage_gamma, stage_beta, stage_mean, stage_var,
                             bott_w, bott_gamma, bott_beta, bott_mean, bott_var,
                             bin_sizes=bin_sizes, compute_dtype=jnp.bfloat16,
                             hw_tile=128, k_tile=128)
    out = jax.block_until_ready(out)

    ref = _reference_forward(x, stage_w, stage_gamma, stage_beta, stage_mean, stage_var,
                             bott_w, bott_gamma, bott_beta, bott_mean, bott_var,
                             bin_sizes=bin_sizes)
    assert out.shape == (N, Cout, H, W), out.shape
    max_err = float(jnp.max(jnp.abs(out - ref)))
    rel_l2 = float(jnp.linalg.norm(out - ref) / (jnp.linalg.norm(ref) + 1e-12))
    # bf16 matmul operands with f32 accumulation: tolerance reflects bf16 rounding.
    assert max_err < 7e-2 and rel_l2 < 2.5e-2, (max_err, rel_l2)
    print("KERNEL_OK")
</pallas_src>

<mosaic_0001>
module attributes {stable_mosaic.version = 11 : i64} {
  func.func @_stage_bins_kernel(%arg0: i32, %arg1: i32, %arg2: memref<1x16x128xbf16, #tpu.memory_space<vmem>>, %arg3: memref<128x50xbf16, #tpu.memory_space<vmem>>, %arg4: memref<16x16xbf16, #tpu.memory_space<vmem>>, %arg5: memref<16x50xf32, #tpu.memory_space<vmem>>, %arg6: memref<16x50xf32, #tpu.memory_space<vmem>>, %arg7: memref<1x16x50xbf16, #tpu.memory_space<vmem>>, %arg8: memref<16x50xf32, #tpu.memory_space<vmem>>) attributes {dimension_semantics = [#tpu.dimension_semantics<parallel>, #tpu.dimension_semantics<arbitrary>], iteration_bounds = array<i64: 2, 2>, scalar_prefetch = 0 : i64, scratch_operands = 1 : i64, tpu.core_type = #tpu.core_type<tc>, window_params = [{transform_indices = @transform_0, window_bounds = array<i64: 1, 16, 128>}, {transform_indices = @transform_1, window_bounds = array<i64: 128, 50>}, {pipeline_mode = #tpu.pipeline_mode<synchronous>, transform_indices = @transform_2, window_bounds = array<i64: 16, 16>}, {pipeline_mode = #tpu.pipeline_mode<synchronous>, transform_indices = @transform_3, window_bounds = array<i64: 16, 50>}, {pipeline_mode = #tpu.pipeline_mode<synchronous>, transform_indices = @transform_4, window_bounds = array<i64: 16, 50>}, {transform_indices = @transform_5, window_bounds = array<i64: 1, 16, 50>}]} {
    %c0_i32 = arith.constant 0 : i32
    %0 = arith.cmpi eq, %arg1, %c0_i32 : i32
    %1 = arith.extui %0 : i1 to i32
    %c0_i32_0 = arith.constant 0 : i32
    %2 = arith.cmpi ne, %1, %c0_i32_0 : i32
    scf.if %2 {
      %cst_10 = arith.constant 0.000000e+00 : f32
      %13 = vector.broadcast %cst_10 : f32 to vector<16x50xf32>
      %c0_11 = arith.constant 0 : index
      %c0_12 = arith.constant 0 : index
      %14 = vector.load %arg8[%c0_11, %c0_12] : memref<16x50xf32, #tpu.memory_space<vmem>>, vector<16x50xf32>
      tpu.vector_store %arg8[%c0_11, %c0_12], %13 {strides = array<i32>} : memref<16x50xf32, #tpu.memory_space<vmem>>, vector<16x50xf32>,
    } else {
    }
    %c0 = arith.constant 0 : index
    %c0_1 = arith.constant 0 : index
    %3 = vector.load %arg8[%c0, %c0_1] : memref<16x50xf32, #tpu.memory_space<vmem>>, vector<16x50xf32>
    %c0_2 = arith.constant 0 : index
    %c0_3 = arith.constant 0 : index
    %c0_4 = arith.constant 0 : index
    %4 = vector.load %arg2[%c0_2, %c0_3, %c0_4] : memref<1x16x128xbf16, #tpu.memory_space<vmem>>, vector<1x16x128xbf16>
    %5 = vector.shape_cast %4 : vector<1x16x128xbf16> to vector<16x128xbf16>
    %c0_5 = arith.constant 0 : index
    %c0_6 = arith.constant 0 : index
    %6 = vector.load %arg3[%c0_5, %c0_6] : memref<128x50xbf16, #tpu.memory_space<vmem>>, vector<128x50xbf16>
    %cst = arith.constant dense<0.000000e+00> : vector<16x50xf32>
    %7 = tpu.matmul %5, %6, %cst {dimension_numbers = #tpu.dot_dimension_numbers<[1], [0], [0], [1], [0, 0, 1, 1], [], []>} : vector<16x128xbf16>, vector<128x50xbf16>, vector<16x50xf32> -> vector<16x50xf32>
    %8 = arith.addf %3, %7 : vector<16x50xf32>
    %c0_7 = arith.constant 0 : index
    %c0_8 = arith.constant 0 : index
    %9 = vector.load %arg8[%c0_7, %c0_8] : memref<16x50xf32, #tpu.memory_space<vmem>>, vector<16x50xf32>
    tpu.vector_store %arg8[%c0_7, %c0_8], %8 {strides = array<i32>} : memref<16x50xf32, #tpu.memory_space<vmem>>, vector<16x50xf32>,
    %c1_i32 = arith.constant 1 : i32
    %10 = arith.cmpi eq, %arg1, %c1_i32 : i32
    %11 = arith.extui %10 : i1 to i32
    %c0_i32_9 = arith.constant 0 : i32
    %12 = arith.cmpi ne, %11, %c0_i32_9 : i32
    scf.if %12 {
      %c0_10 = arith.constant 0 : index
      %c0_11 = arith.constant 0 : index
      %13 = vector.load %arg8[%c0_10, %c0_11] : memref<16x50xf32, #tpu.memory_space<vmem>>, vector<16x50xf32>
      %14 = arith.truncf %13 : vector<16x50xf32> to vector<16x50xbf16>
      %c0_12 = arith.constant 0 : index
      %c0_13 = arith.constant 0 : index
      %15 = vector.load %arg4[%c0_12, %c0_13] : memref<16x16xbf16, #tpu.memory_space<vmem>>, vector<16x16xbf16>
      %cst_14 = arith.constant dense<0.000000e+00> : vector<16x50xf32>
      %16 = tpu.matmul %15, %14, %cst_14 {dimension_numbers = #tpu.dot_dimension_numbers<[1], [0], [0], [1], [0, 0, 1, 1], [], []>} : vector<16x16xbf16>, vector<16x50xbf16>, vector<16x50xf32> -> vector<16x50xf32>
      %c0_15 = arith.constant 0 : index
      %c0_16 = arith.constant 0 : index
      %17 = vector.load %arg5[%c0_15, %c0_16] : memref<16x50xf32, #tpu.memory_space<vmem>>, vector<16x50xf32>
      %18 = arith.mulf %16, %17 : vector<16x50xf32>
      %c0_17 = arith.constant 0 : index
      %c0_18 = arith.constant 0 : index
      %19 = vector.load %arg6[%c0_17, %c0_18] : memref<16x50xf32, #tpu.memory_space<vmem>>, vector<16x50xf32>
      %20 = arith.addf %18, %19 : vector<16x50xf32>
      %cst_19 = arith.constant 0.000000e+00 : f32
      %21 = vector.broadcast %cst_19 : f32 to vector<16x50xf32>
      %22 = arith.maximumf %20, %21 : vector<16x50xf32>
      %23 = arith.truncf %22 : vector<16x50xf32> to vector<16x50xbf16>
      %c0_20 = arith.constant 0 : index
      %c0_21 = arith.constant 0 : index
      %c0_22 = arith.constant 0 : index
      %24 = vector.load %arg7[%c0_20, %c0_21, %c0_22] : memref<1x16x50xbf16, #tpu.memory_space<vmem>>, vector<1x16x50xbf16>
      %25 = vector.shape_cast %24 : vector<1x16x50xbf16> to vector<16x50xbf16>
      %26 = vector.shape_cast %23 : vector<16x50xbf16> to vector<1x16x50xbf16>
      tpu.vector_store %arg7[%c0_20, %c0_21, %c0_22], %26 {strides = array<i32>} : memref<1x16x50xbf16, #tpu.memory_space<vmem>>, vector<1x16x50xbf16>,
    } else {
    }
    return
  }
  func.func @transform_0(%arg0: i32, %arg1: i32) -> (i32, i32, i32) {
    %c0_i32 = arith.constant 0 : i32
    %c0_i32_0 = arith.constant 0 : i32
    return %arg0, %c0_i32, %arg1 : i32, i32, i32
  }
  func.func @transform_1(%arg0: i32, %arg1: i32) -> (i32, i32) {
    %c0_i32 = arith.constant 0 : i32
    %c0_i32_0 = arith.constant 0 : i32
    return %arg1, %c0_i32 : i32, i32
  }
  func.func @transform_2(%arg0: i32, %arg1: i32) -> (i32, i32) {
    %c0_i32 = arith.constant 0 : i32
    %c0_i32_0 = arith.constant 0 : i32
    %c0_i32_1 = arith.constant 0 : i32
    return %c0_i32, %c0_i32_0 : i32, i32
  }
  func.func @transform_3(%arg0: i32, %arg1: i32) -> (i32, i32) {
    %c0_i32 = arith.constant 0 : i32
    %c0_i32_0 = arith.constant 0 : i32
    %c0_i32_1 = arith.constant 0 : i32
    return %c0_i32, %c0_i32_0 : i32, i32
  }
  func.func @transform_4(%arg0: i32, %arg1: i32) -> (i32, i32) {
    %c0_i32 = arith.constant 0 : i32
    %c0_i32_0 = arith.constant 0 : i32
    %c0_i32_1 = arith.constant 0 : i32
    return %c0_i32, %c0_i32_0 : i32, i32
  }
  func.func @transform_5(%arg0: i32, %arg1: i32) -> (i32, i32, i32) {
    %c0_i32 = arith.constant 0 : i32
    %c0_i32_0 = arith.constant 0 : i32
    %c0_i32_1 = arith.constant 0 : i32
    return %arg0, %c0_i32, %c0_i32_0 : i32, i32, i32
  }
}

</mosaic_0001>

<llo_original>
// kernel: tpu_custom_call.1
$region0: #{tpu_custom_call.1}
  #allocation0 [shape = 'u32[]', space=smem, size = 0x4, offset = 0x4, fixed_abs, tag = 'smem constant byte address 0x4 - core index']
  #allocation1 [shape = 'u32[144,128]{1,0:T(1,128)}', space=vmem, size = 0x12000, scoped, tag = 'internal scratch']
  #allocation2 [shape = 'f32[16,50]{1,0:T(8,128)}', space=vmem, size = 0x2000, scoped, tag = 'scratch operand']
  %s0 = inlined_call_operand.vmem [shape: bf16[2,16,256], index: 0, kind: input, shape index: {}]
  %s1 = inlined_call_operand.vmem [shape: bf16[256,50], index: 1, kind: input, shape index: {}]
  %s2 = inlined_call_operand.vmem [shape: bf16[16,16], index: 2, kind: input, shape index: {}]
  %s3 = inlined_call_operand.vmem [shape: f32[16,50], index: 3, kind: input, shape index: {}]
  %s4 = inlined_call_operand.vmem [shape: f32[16,50], index: 4, kind: input, shape index: {}]
  %s5 = inlined_call_operand.hbm [shape: bf16[2,16,50], index: 5, kind: output, shape index: {}]
  %s6 = sld [smem:[#allocation0]]
  $region102: #{tpu_custom_call.1} parent=0
    _
  %s8 = ssub.s32 1, %s6
  %s9 = scalar_select 0, %s8, %s6
  $region1: #{tpu_custom_call.1} parent=0
    #allocation3 [shape = 'u8[8192]{0}', space=vmem, size = 0x2000, scoped, tag = 'input window, operand 0']
    #allocation4 [shape = 'u8[8192]{0}', space=vmem, size = 0x2000, scoped, tag = 'output window, operand 0']
    #allocation5 [shape = 's32[2]{0}', space=sflag, size = 0x8, scoped, tag = 'scoped memory for tpu_custom_call.1']
    %10 = vsyncpa [#allocation5], 0
    %s11 = scalar_lea.sflag [#allocation5], 1
    %12 = vsyncpa %s11, 0
    loop: start=0, step=1, limit=6
    $region2: #{tpu_custom_call.1} parent=1 // loop_pre_header
      _
    $region3: #{tpu_custom_call.1} parent=1 // loop_header
      %s14 = sphi 0, %s18
      %p15 = scmp.ge.s32.totalorder %s14, 6
      %s21 = sphi 0, %s33
      %s22 = sphi 0, %s29
      %s23 = sphi 0, %s21
      %s24 = sphi 0, %s22
      %s25 = sphi 0, %s23
      %s26 = sphi 0, %s24
      %s38 = sphi 0, %s40
      %s41 = sphi 0, %s38
      %s42 = sphi 0, %s41
      %s58 = sphi 0, %s42
      %s64 = sphi 0, %s66
      %s67 = sphi 0, %s64
      %s68 = sphi 0, %s67
      %s84 = sphi 0, %s68
      %s88 = sphi 0, %s88
      %s90 = sphi 0, %s88
      %s91 = sphi 0, %s90
      %s105 = sphi 0, %s91
      %s109 = sphi 0, %s109
      %s111 = sphi 0, %s109
      %s112 = sphi 0, %s111
      %s126 = sphi 0, %s112
      %s130 = sphi 0, %s130
      %s132 = sphi 0, %s130
      %s133 = sphi 0, %s132
      %s147 = sphi 0, %s133
      %s153 = sphi 0, %s155
      %s156 = sphi 0, %s153
      %s157 = sphi 0, %s156
      %s173 = sphi 0, %s157
    $region4: #{tpu_custom_call.1} parent=1 // loop_header_branch
      %17 = sbr.rel (%p15) target = $region8
    $region5: #{tpu_custom_call.1} parent=1 // loop_body
      %s19 = ssub.s32 %s14, 1
      %s20 = ssub.s32 %s14, 2
      %s27 = sadd.s32 1, %s22
      %p28 = scmp.ge.s32.totalorder %s27, 2
      %s29 = scalar_select %p28, 0, %s27
      %s30 = sadd.s32 1, %s21
      %s31 = scalar_select %p28, %s30, %s21
      %p32 = scmp.ge.s32.totalorder %s31, 2
      %s33 = scalar_select %p32, 0, %s31
      %s34 = ssub.s32 %s21, %s33
      %s35 = ssub.s32 %s22, %s29
      %s36 = sor.u32 %s34, %s35
      %p37 = scmp.eq.s32.totalorder %s36, 0
      %s39 = sadd.s32 %s38, 1
      %s40 = scalar_select %p37, %s38, %s39
      %p43 = pneg %p37
      %p44 = scmp.eq.s32.totalorder %s14, 3
      %p45 = por %p43, %p44
      %p46 = scmp.ne.s32.totalorder %s38, %s41
      %p47 = scmp.eq.s32.totalorder %s14, 0
      %p48 = por %p46, %p47
      %p49 = scmp.ne.s32.totalorder %s38, %s41
      %p50 = scmp.eq.s32.totalorder %s19, 3
      %p51 = por %p49, %p50
      %p52 = scmp.ne.s32.totalorder %s41, %s42
      %p53 = scmp.eq.s32.totalorder %s19, 0
      %p54 = por %p52, %p53
      %p55 = scmp.ne.s32.totalorder %s41, %s42
      %p56 = scmp.eq.s32.totalorder %s20, 3
      %p57 = por %p55, %p56
      %p59 = scmp.ne.s32.totalorder %s42, %s58
      %p60 = scmp.eq.s32.totalorder %s20, 0
      %p61 = por %p59, %p60
      %s62 = ssub.s32 %s22, %s29
      %p63 = scmp.eq.s32.totalorder %s62, 0
      %s65 = sadd.s32 %s64, 1
      %s66 = scalar_select %p63, %s64, %s65
      %p69 = pneg %p63
      %p70 = scmp.eq.s32.totalorder %s14, 3
      %p71 = por %p69, %p70
      %p72 = scmp.ne.s32.totalorder %s64, %s67
      %p73 = scmp.eq.s32.totalorder %s14, 0
      %p74 = por %p72, %p73
      %p75 = scmp.ne.s32.totalorder %s64, %s67
      %p76 = scmp.eq.s32.totalorder %s19, 3
      %p77 = por %p75, %p76
      %p78 = scmp.ne.s32.totalorder %s67, %s68
      %p79 = scmp.eq.s32.totalorder %s19, 0
      %p80 = por %p78, %p79
      %p81 = scmp.ne.s32.totalorder %s67, %s68
      %p82 = scmp.eq.s32.totalorder %s20, 3
      %p83 = por %p81, %p82
      %p85 = scmp.ne.s32.totalorder %s68, %s84
      %p86 = scmp.eq.s32.totalorder %s20, 0
      %p87 = por %p85, %p86
      %s89 = sadd.s32 %s88, 1
      %p92 = scmp.eq.s32.totalorder %s14, 3
      %p93 = scmp.ne.s32.totalorder %s88, %s90
      %p94 = scmp.eq.s32.totalorder %s14, 0
      %p95 = por %p93, %p94
      %p96 = scmp.ne.s32.totalorder %s88, %s90
      %p97 = scmp.eq.s32.totalorder %s19, 3
      %p98 = por %p96, %p97
      %p99 = scmp.ne.s32.totalorder %s90, %s91
      %p100 = scmp.eq.s32.totalorder %s19, 0
      %p101 = por %p99, %p100
      %p102 = scmp.ne.s32.totalorder %s90, %s91
      %p103 = scmp.eq.s32.totalorder %s20, 3
      %p104 = por %p102, %p103
      %p106 = scmp.ne.s32.totalorder %s91, %s105
      %p107 = scmp.eq.s32.totalorder %s20, 0
      %p108 = por %p106, %p107
      %s110 = sadd.s32 %s109, 1
      %p113 = scmp.eq.s32.totalorder %s14, 3
      %p114 = scmp.ne.s32.totalorder %s109, %s111
      %p115 = scmp.eq.s32.totalorder %s14, 0
      %p116 = por %p114, %p115
      %p117 = scmp.ne.s32.totalorder %s109, %s111
      %p118 = scmp.eq.s32.totalorder %s19, 3
      %p119 = por %p117, %p118
      %p120 = scmp.ne.s32.totalorder %s111, %s112
      %p121 = scmp.eq.s32.totalorder %s19, 0
      %p122 = por %p120, %p121
      %p123 = scmp.ne.s32.totalorder %s111, %s112
      %p124 = scmp.eq.s32.totalorder %s20, 3
      %p125 = por %p123, %p124
      %p127 = scmp.ne.s32.totalorder %s112, %s126
      %p128 = scmp.eq.s32.totalorder %s20, 0
      %p129 = por %p127, %p128
      %s131 = sadd.s32 %s130, 1
      %p134 = scmp.eq.s32.totalorder %s14, 3
      %p135 = scmp.ne.s32.totalorder %s130, %s132
      %p136 = scmp.eq.s32.totalorder %s14, 0
      %p137 = por %p135, %p136
      %p138 = scmp.ne.s32.totalorder %s130, %s132
      %p139 = scmp.eq.s32.totalorder %s19, 3
      %p140 = por %p138, %p139
      %p141 = scmp.ne.s32.totalorder %s132, %s133
      %p142 = scmp.eq.s32.totalorder %s19, 0
      %p143 = por %p141, %p142
      %p144 = scmp.ne.s32.totalorder %s132, %s133
      %p145 = scmp.eq.s32.totalorder %s20, 3
      %p146 = por %p144, %p145
      %p148 = scmp.ne.s32.totalorder %s133, %s147
      %p149 = scmp.eq.s32.totalorder %s20, 0
      %p150 = por %p148, %p149
      %s151 = ssub.s32 %s21, %s33
      %p152 = scmp.eq.s32.totalorder %s151, 0
      %s154 = sadd.s32 %s153, 1
      %s155 = scalar_select %p152, %s153, %s154
      %p158 = pneg %p152
      %p159 = scmp.eq.s32.totalorder %s14, 3
      %p160 = por %p158, %p159
      %p161 = scmp.ne.s32.totalorder %s153, %s156
      %p162 = scmp.eq.s32.totalorder %s14, 0
      %p163 = por %p161, %p162
      %p164 = scmp.ne.s32.totalorder %s153, %s156
      %p165 = scmp.eq.s32.totalorder %s19, 3
      %p166 = por %p164, %p165
      %p167 = scmp.ne.s32.totalorder %s156, %s157
      %p168 = scmp.eq.s32.totalorder %s19, 0
      %p169 = por %p167, %p168
      %p170 = scmp.ne.s32.totalorder %s156, %s157
      %p171 = scmp.eq.s32.totalorder %s20, 3
      %p172 = por %p170, %p171
      %p174 = scmp.ne.s32.totalorder %s157, %s173
      %p175 = scmp.eq.s32.totalorder %s20, 0
      %p176 = por %p174, %p175
      %p177 = scmp.le.s32.totalorder 1, %s14
      %p178 = scmp.lt.s32.totalorder %s14, 5
      %p179 = pnand %p177, %p178
      %p180 = pneg %p179
      // Predicated region
      $region9: #{tpu_custom_call.1} parent=5 // pred_check
        _
      $region10: #{tpu_custom_call.1} parent=5 // pred_check_branch
        %182 = sbr.rel (%p179) target = $region12
      $region11: #{tpu_custom_call.1} parent=5 // pred_region
        %s183 = ssub.s32 %s14, 1
        // Predicated region
        $region13: #{tpu_custom_call.1} parent=11 // pred_check
          %p184 = pneg %p101
        $region14: #{tpu_custom_call.1} parent=11 // pred_check_branch
          %186 = sbr.rel (%p184) target = $region16
        $region15: #{tpu_custom_call.1} parent=11 // pred_region
          _
        $region16: #{tpu_custom_call.1} parent=11 // pred_fallthru
          _
        // Predicated region
        $region17: #{tpu_custom_call.1} parent=11 // pred_check
          %p187 = pneg %p122
        $region18: #{tpu_custom_call.1} parent=11 // pred_check_branch
          %189 = sbr.rel (%p187) target = $region20
        $region19: #{tpu_custom_call.1} parent=11 // pred_region
          _
        $region20: #{tpu_custom_call.1} parent=11 // pred_fallthru
          _
        // Predicated region
        $region21: #{tpu_custom_call.1} parent=11 // pred_check
          %p190 = pneg %p143
        $region22: #{tpu_custom_call.1} parent=11 // pred_check_branch
          %192 = sbr.rel (%p190) target = $region24
        $region23: #{tpu_custom_call.1} parent=11 // pred_region
          _
        $region24: #{tpu_custom_call.1} parent=11 // pred_fallthru
          _
      $region12: #{tpu_custom_call.1} parent=5 // pred_fallthru
        _
      %p193 = scmp.lt.s32.totalorder %s14, 4
      // Predicated region
      $region25: #{tpu_custom_call.1} parent=5 // pred_check
        %p194 = pneg %p193
      $region26: #{tpu_custom_call.1} parent=5 // pred_check_branch
        %196 = sbr.rel (%p194) target = $region28
      $region27: #{tpu_custom_call.1} parent=5 // pred_region
        // Predicated region
        $region29: #{tpu_custom_call.1} parent=27 // pred_check
          %p197 = pneg %p48
        $region30: #{tpu_custom_call.1} parent=27 // pred_check_branch
          %199 = sbr.rel (%p197) target = $region32
        $region31: #{tpu_custom_call.1} parent=27 // pred_region
          %s200 = sand.u32 %s38, 1
          %s201 = sand.u32 %s38, 1
          %s202 = smul.addr %s201, 8
          %s203 = scalar_lea.vmem [#allocation3], %s202
          %s204 = smul.addr %s21, 4
          %s205 = sadd.s32 %s22, %s204
          %s206 = smul.addr %s205, 4
          %s207 = scalar_lea.vmem %s0, %s206
          // Predicated region
          $region33: #{tpu_custom_call.1} parent=31 // pred_check
            _
          $region34: #{tpu_custom_call.1} parent=31 // pred_check_branch
            %209 = sbr.rel (0) target = $region36
          $region35: #{tpu_custom_call.1} parent=31 // pred_region
            // Predicated region
            $region37: #{tpu_custom_call.1} parent=35 // pred_check
              _
            $region38: #{tpu_custom_call.1} parent=35 // pred_check_branch
              %211 = sbr.rel target = $region40
            $region39: #{tpu_custom_call.1} parent=35 // pred_region
              // Predicated region
              $region52: #{tpu_custom_call.1} parent=39 // pred_check
                _
              $region53: #{tpu_custom_call.1} parent=39 // pred_check_branch
                %229 = sbr.rel (0) target = $region55
              $region54: #{tpu_custom_call.1} parent=39 // pred_region
                loop: start=0, step=1, limit=1
                $region56: #{tpu_custom_call.1} parent=54 // loop_pre_header
                  _
                $region57: #{tpu_custom_call.1} parent=54 // loop_header
                  %s231 = sphi 0, %s235
                  %p232 = scmp.ge.s32.totalorder %s231, 1
                  %s236 = sphi %s207, %s207
                  %s237 = sphi %s203, %s203
                $region58: #{tpu_custom_call.1} parent=54 // loop_header_branch
                  %234 = sbr.rel (%p232) target = $region62
                $region59: #{tpu_custom_call.1} parent=54 // loop_body
                  _
                $region60: #{tpu_custom_call.1} parent=54 // loop_footer
                  %s235 = sadd.s32 1, %s231
                $region61: #{tpu_custom_call.1} parent=54 // loop_footer_branch
                  %230 = sbr.rel target = $region57
                $region62: #{tpu_custom_call.1} parent=54 // loop_exit
                  _
                %s239 = ssub.s32 16, 1
                loop: start=0, step=1, limit=1
                $region63: #{tpu_custom_call.1} parent=54 // loop_pre_header
                  _
                $region64: #{tpu_custom_call.1} parent=54 // loop_header
                  %s241 = sphi 0, %s245
                  %p242 = scmp.ge.s32.totalorder %s241, 1
                  %s246 = sphi %s207, %s207
                  %s247 = sphi %s203, %s203
                $region65: #{tpu_custom_call.1} parent=54 // loop_header_branch
                  %244 = sbr.rel (%p242) target = $region69
                $region66: #{tpu_custom_call.1} parent=54 // loop_body
                  %v248 = vld [vmem:[%s246] sm:%s239]
                  %249 = vst [vmem:[%s247] sm:%s239] %v248
                  %v250 = vld [vmem:[%s246 + $0x8] sm:%s239]
                  %251 = vst [vmem:[%s247 + $0x4] sm:%s239] %v250
                $region67: #{tpu_custom_call.1} parent=54 // loop_footer
                  %s245 = sadd.s32 1, %s241
                $region68: #{tpu_custom_call.1} parent=54 // loop_footer_branch
                  %240 = sbr.rel target = $region64
                $region69: #{tpu_custom_call.1} parent=54 // loop_exit
                  _
              $region55: #{tpu_custom_call.1} parent=39 // pred_fallthru
                _
            $region40: #{tpu_custom_call.1} parent=35 // pred_fallthru
              _
            // Predicated region
            $region41: #{tpu_custom_call.1} parent=35 // pred_check
              _
            $region42: #{tpu_custom_call.1} parent=35 // pred_check_branch
              %213 = sbr.rel (0) target = $region44
            $region43: #{tpu_custom_call.1} parent=35 // pred_region
              %s215 = ssub.s32 16, 1
              loop: start=0, step=1, limit=1
              $region45: #{tpu_custom_call.1} parent=43 // loop_pre_header
                _
              $region46: #{tpu_custom_call.1} parent=43 // loop_header
                %s217 = sphi 0, %s221
                %p218 = scmp.ge.s32.totalorder %s217, 1
                %s222 = sphi %s207, %s207
                %s223 = sphi %s203, %s203
              $region47: #{tpu_custom_call.1} parent=43 // loop_header_branch
                %220 = sbr.rel (%p218) target = $region51
              $region48: #{tpu_custom_call.1} parent=43 // loop_body
                %v224 = vld [vmem:[%s222] sm:%s215]
                %225 = vst [vmem:[%s223] sm:%s215] %v224
                %v226 = vld [vmem:[%s222 + $0x8] sm:%s215]
                %227 = vst [vmem:[%s223 + $0x4] sm:%s215] %v226
              $region49: #{tpu_custom_call.1} parent=43 // loop_footer
                %s221 = sadd.s32 1, %s217
              $region50: #{tpu_custom_call.1} parent=43 // loop_footer_branch
                %216 = sbr.rel target = $region46
              $region51: #{tpu_custom_call.1} parent=43 // loop_exit
                _
            $region44: #{tpu_custom_call.1} parent=35 // pred_fallthru
              _
          $region36: #{tpu_custom_call.1} parent=31 // pred_fallthru
            _
          %252 = vnop
        $region32: #{tpu_custom_call.1} parent=27 // pred_fallthru
          _
        // Predicated region
        $region70: #{tpu_custom_call.1} parent=27 // pred_check
          %p253 = pneg %p74
        $region71: #{tpu_custom_call.1} parent=27 // pred_check_branch
          %255 = sbr.rel (%p253) target = $region73
        $region72: #{tpu_custom_call.1} parent=27 // pred_region
          %s256 = smul.u32 16, %s22
          %p257 = scmp.lt.s32.totalorder %s256, 31
          %s258 = scalar_select %p257, %s256, 31
          %s259 = smul.addr %s258, 4
          %s260 = scalar_lea.vmem %s1, %s259
          %s261 = smul.u32 16, %s22
        $region73: #{tpu_custom_call.1} parent=27 // pred_fallthru
          _
      $region28: #{tpu_custom_call.1} parent=5 // pred_fallthru
        _
      %p262 = scmp.le.s32.totalorder 1, %s14
      %p263 = scmp.lt.s32.totalorder %s14, 5
      %p264 = pnand %p262, %p263
      %p265 = pneg %p264
      // Predicated region
      $region74: #{tpu_custom_call.1} parent=5 // pred_check
        _
      $region75: #{tpu_custom_call.1} parent=5 // pred_check_branch
        %267 = sbr.rel (%p264) target = $region77
      $region76: #{tpu_custom_call.1} parent=5 // pred_region
        %s268 = ssub.s32 %s14, 1
        %s269 = sand.u32 %s41, 1
        %s270 = sand.u32 %s41, 1
        %s271 = smul.addr %s270, 8
        %s272 = scalar_lea.vmem [#allocation3], %s271
        // Predicated region
        $region78: #{tpu_custom_call.1} parent=76 // pred_check
          %p273 = pneg %p54
        $region79: #{tpu_custom_call.1} parent=76 // pred_check_branch
          %275 = sbr.rel (%p273) target = $region81
        $region80: #{tpu_custom_call.1} parent=76 // pred_region
          _
        $region81: #{tpu_custom_call.1} parent=76 // pred_fallthru
          _
        %s276 = sand.u32 %s41, 1
        %s277 = sand.u32 %s41, 1
        %s278 = smul.addr %s277, 8
        %s279 = scalar_lea.vmem [#allocation3], %s278
        %p280 = pneg %p54
        %p281 = pneg %p51
        %s282 = smul.u32 16, %s24
        %p283 = scmp.lt.s32.totalorder %s282, 31
        %s284 = scalar_select %p283, %s282, 31
        %s285 = smul.addr %s284, 4
        %s286 = scalar_lea.vmem %s1, %s285
        %p287 = pneg %p80
        %p288 = pneg %p77
        %p289 = pneg %p101
        %p290 = pneg %p98
        %p291 = pneg %p122
        %p292 = pneg %p119
        %p293 = pneg %p143
        %p294 = pneg %p140
        %p295 = pneg %p169
        %p296 = pneg %p166
        %s297 = sand.u32 %s156, 1
        %s298 = scalar_lea.sflag [#allocation5], %s297
        %s299 = sand.u32 %s156, 1
        %s300 = smul.addr %s299, 8
        %s301 = scalar_lea.vmem [#allocation4], %s300
        %s302 = smul.u32 16, %s24
        %p303 = scmp.lt.s32.totalorder %s302, 31
        %s304 = scalar_select %p303, %s302, 31
        %s305 = smul.addr %s304, 4
        %s306 = scalar_lea.vmem %s1, %s305
        %s307 = smul.u32 16, %s24
        %p309 = scmp.eq.s32.totalorder %s24, 0
        // Predicated region
        $region82: #{tpu_custom_call.1} parent=76 // pred_check
          %p310 = pneg %p309
        $region83: #{tpu_custom_call.1} parent=76 // pred_check_branch
          %312 = sbr.rel (%p310) target = $region85
        $region84: #{tpu_custom_call.1} parent=76 // pred_region
          %vm313 = vcmask 408576
          %314 = vst.msk [vmem:[#allocation2] sm:$0xff] %vm313, 0.0
          %315 = vst.msk [vmem:[#allocation2 + $0x8] sm:$0xff] %vm313, 0.0
        $region85: #{tpu_custom_call.1} parent=76 // pred_fallthru
          _
        %v316 = vld [vmem:[#allocation2] sm:$0xff]
        %v317 = vld [vmem:[#allocation2 + $0x8] sm:$0xff]
        %v318 = vld [vmem:[%s272] sm:$0xf]
        %v319 = vld [vmem:[%s272 + $0x4] sm:$0xf]
        %v320 = vld [vmem:[%s306] sm:$0xf]
        %v321 = vld [vmem:[%s306 + $0x4] sm:$0xf]
        %v322 = vld [vmem:[%s306 + $0x8] sm:$0xf]
        %v323 = vld [vmem:[%s306 + $0xc] sm:$0xf]
        %v324 = vld [vmem:[%s306 + $0x10] sm:$0xf]
        %v325 = vld [vmem:[%s306 + $0x14] sm:$0xf]
        %v326 = vld [vmem:[%s306 + $0x18] sm:$0xf]
        %v327 = vld [vmem:[%s306 + $0x1c] sm:$0xf]
        %v328 = vld [vmem:[%s306 + $0x20] sm:$0xf]
        %v329 = vld [vmem:[%s306 + $0x24] sm:$0xf]
        %v330 = vld [vmem:[%s306 + $0x28] sm:$0xf]
        %v331 = vld [vmem:[%s306 + $0x2c] sm:$0xf]
        %v332 = vld [vmem:[%s306 + $0x30] sm:$0xf]
        %v333 = vld [vmem:[%s306 + $0x34] sm:$0xf]
        %v334 = vld [vmem:[%s306 + $0x38] sm:$0xf]
        %v335 = vld [vmem:[%s306 + $0x3c] sm:$0xf]
        %v338 = vunpack.c.l.b16 %v318
        %v339 = vunpack.c.l.b16 %v319
        %v340 = vpack.c.b16 %v339, %v338
        %v358 = vunpack.c.l.b16 %v320
        %v359 = vunpack.c.l.b16 %v321
        %v360 = vunpack.c.l.b16 %v322
        %v361 = vunpack.c.l.b16 %v323
        %v362 = vunpack.c.l.b16 %v324
        %v363 = vunpack.c.l.b16 %v325
        %v364 = vunpack.c.l.b16 %v326
        %v365 = vunpack.c.l.b16 %v327
        %v366 = vunpack.c.l.b16 %v328
        %v367 = vunpack.c.l.b16 %v329
        %v368 = vunpack.c.l.b16 %v330
        %v369 = vunpack.c.l.b16 %v331
        %v370 = vunpack.c.l.b16 %v332
        %v371 = vunpack.c.l.b16 %v333
        %v372 = vunpack.c.l.b16 %v334
        %v373 = vunpack.c.l.b16 %v335
        %v374 = vpack.c.b16 %v359, %v358
        %v375 = vpack.c.b16 %v361, %v360
        %v376 = vpack.c.b16 %v363, %v362
        %v377 = vpack.c.b16 %v365, %v364
        %v378 = vpack.c.b16 %v367, %v366
        %v379 = vpack.c.b16 %v369, %v368
        %v380 = vpack.c.b16 %v371, %v370
        %v381 = vpack.c.b16 %v373, %v372
        %390 = vmatprep.subr.bf16.mxu0 0
        %391 = vmatpush1.bf16.msra.mxu0 %v381
        %392 = vmatprep.subr.bf16.mxu0 0
        %393 = vmatpush1.bf16.msra.mxu0 %v380
        %394 = vmatprep.subr.bf16.mxu0 0
        %395 = vmatpush1.bf16.msra.mxu0 %v379
        %396 = vmatprep.subr.bf16.mxu0 0
        %397 = vmatpush1.bf16.msra.mxu0 %v378
        %398 = vmatprep.subr.bf16.mxu0 0
        %399 = vmatpush1.bf16.msra.mxu0 %v377
        %400 = vmatprep.subr.bf16.mxu0 0
        %401 = vmatpush1.bf16.msra.mxu0 %v376
        %402 = vmatprep.subr.bf16.mxu0 0
        %403 = vmatpush1.bf16.msra.mxu0 %v375
        %404 = vmatprep.subr.bf16.mxu0 0
        %405 = vmatpush1.bf16.msra.mxu0 %v374
        %406 = vmatprep.subr.bf16.mxu0 0
        %407 = vmatpush2.bf16.msra.mxu0 0
        %408 = vmatprep.subr.bf16.mxu0 0
        %409 = vmatpush2.bf16.msra.mxu0 0
        %410 = vmatprep.subr.bf16.mxu0 0
        %411 = vmatpush2.bf16.msra.mxu0 0
        %412 = vmatprep.subr.bf16.mxu0 0
        %413 = vmatpush2.bf16.msra.mxu0 0
        %414 = vmatprep.subr.bf16.mxu0 0
        %415 = vmatpush2.bf16.msra.mxu0 0
        %416 = vmatprep.subr.bf16.mxu0 0
        %417 = vmatpush2.bf16.msra.mxu0 0
        %418 = vmatprep.subr.bf16.mxu0 0
        %419 = vmatpush2.bf16.msra.mxu0 0
        %420 = vmatprep.subr.bf16.mxu0 0
        %421 = vmatpush2.bf16.msra.mxu0 0
        %422 = vmatprep.mubr.bf16.mxu0 0
        %423 = vmatmul.mubr.bf16.gmra.mxu0 %v340
        %v424 = vpop.f32.mrf.mxu0
        %v425 = vadd.f32 0.0, %v424
        %v426 = vpop.f32.mrf.mxu0
        %v427 = vpop.f32.mrf.mxu0
        %v428 = vadd.f32 0.0, %v427
        %v429 = vpop.f32.mrf.mxu0
        %430 = vdwg.mxu0
        %v431 = vadd.f32 %v316, %v425
        %v432 = vadd.f32 %v317, %v428
        %vm433 = vcmask 408576
        %434 = vst.msk [vmem:[#allocation2] sm:$0xff] %vm433, %v431
        %435 = vst.msk [vmem:[#allocation2 + $0x8] sm:$0xff] %vm433, %v432
        %p436 = scmp.eq.s32.totalorder %s24, 1
        // Predicated region
        $region86: #{tpu_custom_call.1} parent=76 // pred_check
          %p437 = pneg %p436
        $region87: #{tpu_custom_call.1} parent=76 // pred_check_branch
          %439 = sbr.rel (%p437) target = $region89
        $region88: #{tpu_custom_call.1} parent=76 // pred_region
          %v440 = vld [vmem:[#allocation2] sm:$0xff]
          %v441 = vld [vmem:[#allocation2 + $0x8] sm:$0xff]
          %v442 = vpack.c.bf16 %v441, %v440
          %v443 = vld [vmem:[%s2] sm:$0xf]
          %v444 = vld [vmem:[%s2 + $0x4] sm:$0xf]
          %v447 = vunpack.c.l.b16 %v443
          %v448 = vunpack.c.l.b16 %v444
          %v449 = vpack.c.b16 %v448, %v447
          %vm450 = vcmask 130048
          %v452 = vsel %vm450, %v449, 0
          %454 = vmatprep.subr.bf16.mxu0 0
          %455 = vmatpush1.bf16.msra.mxu0 0
          %456 = vmatprep.subr.bf16.mxu0 0
          %457 = vmatpush1.bf16.msra.mxu0 0
          %458 = vmatprep.subr.bf16.mxu0 0
          %459 = vmatpush1.bf16.msra.mxu0 0
          %460 = vmatprep.subr.bf16.mxu0 0
          %461 = vmatpush1.bf16.msra.mxu0 0
          %462 = vmatprep.subr.bf16.mxu0 0
          %463 = vmatpush1.bf16.msra.mxu0 0
          %464 = vmatprep.subr.bf16.mxu0 0
          %465 = vmatpush1.bf16.msra.mxu0 0
          %466 = vmatprep.subr.bf16.mxu0 0
          %467 = vmatpush1.bf16.msra.mxu0 0
          %468 = vmatprep.subr.bf16.mxu0 0
          %469 = vmatpush1.bf16.msra.mxu0 %v442
          %470 = vmatprep.subr.bf16.mxu0 0
          %471 = vmatpush2.bf16.msra.mxu0 0
          %472 = vmatprep.subr.bf16.mxu0 0
          %473 = vmatpush2.bf16.msra.mxu0 0
          %474 = vmatprep.subr.bf16.mxu0 0
          %475 = vmatpush2.bf16.msra.mxu0 0
          %476 = vmatprep.subr.bf16.mxu0 0
          %477 = vmatpush2.bf16.msra.mxu0 0
          %478 = vmatprep.subr.bf16.mxu0 0
          %479 = vmatpush2.bf16.msra.mxu0 0
          %480 = vmatprep.subr.bf16.mxu0 0
          %481 = vmatpush2.bf16.msra.mxu0 0
          %482 = vmatprep.subr.bf16.mxu0 0
          %483 = vmatpush2.bf16.msra.mxu0 0
          %484 = vmatprep.subr.bf16.mxu0 0
          %485 = vmatpush2.bf16.msra.mxu0 0
          %486 = vmatprep.mubr.bf16.mxu0 0
          %487 = vmatmul.mubr.bf16.gmra.mxu0 %v452
          %v488 = vpop.f32.mrf.mxu0
          %v489 = vadd.f32 0.0, %v488
          %v490 = vpop.f32.mrf.mxu0
          %v491 = vpop.f32.mrf.mxu0
          %v492 = vadd.f32 0.0, %v491
          %v493 = vpop.f32.mrf.mxu0
          %494 = vdwg.mxu0
          %v495 = vld [vmem:[%s3] sm:$0xff]
          %v496 = vld [vmem:[%s3 + $0x8] sm:$0xff]
          %v497 = vmul.f32 %v489, %v495
          %v498 = vmul.f32 %v492, %v496
          %v499 = vld [vmem:[%s4] sm:$0xff]
          %v500 = vld [vmem:[%s4 + $0x8] sm:$0xff]
          %v501 = vadd.f32 %v497, %v499
          %v502 = vadd.f32 %v498, %v500
          %v503 = vmax.f32 %v501, 0.0
          %v504 = vmax.f32 %v502, 0.0
          %v505 = vpack.c.bf16 %v504, %v503
          %v507 = vunpack.c.l.b16 %v505
          %v508 = vunpack.c.h.b16 %v505
          %v509 = vpack.c.b16 %v507, %v507
          %v510 = vpack.c.b16 %v508, %v508
          %vm513 = vcmask 404480
          %514 = vst.msk [vmem:[%s301] sm:$0xf] %vm513, %v509
          %515 = vst.msk [vmem:[%s301 + $0x4] sm:$0xf] %vm513, %v510
        $region89: #{tpu_custom_call.1} parent=76 // pred_fallthru
          _
        %s516 = sand.u32 %s156, 1
        %s517 = scalar_lea.sflag [#allocation5], %s516
        %s518 = sand.u32 %s156, 1
        %s519 = smul.addr %s518, 8
        %s520 = scalar_lea.vmem [#allocation4], %s519
        // Predicated region
        $region90: #{tpu_custom_call.1} parent=76 // pred_check
          %p521 = pneg %p166
        $region91: #{tpu_custom_call.1} parent=76 // pred_check_branch
          %523 = sbr.rel (%p521) target = $region93
        $region92: #{tpu_custom_call.1} parent=76 // pred_region
          %s525 = ssub.s32 128, 128
          %526 = vsyncadd %s517, %s525
          %s527 = smul.addr %s23, 2
          %s528 = smul.addr %s527, 64
          %s529 = scalar_lea.hbm %s5, %s528
          %s530 = sshll.u32 %s520, 4
          %s531 = int_to_ptr.vmem [resolvable:$true] %s530
          %536 = dma.vmem_to_hbm [thread:$0]  %s531, 128, %s529, %s517, 64, 64, 4
        $region93: #{tpu_custom_call.1} parent=76 // pred_fallthru
          _
      $region77: #{tpu_custom_call.1} parent=5 // pred_fallthru
        _
      %p537 = scmp.le.s32.totalorder 2, %s14
      // Predicated region
      $region94: #{tpu_custom_call.1} parent=5 // pred_check
        %p538 = pneg %p537
      $region95: #{tpu_custom_call.1} parent=5 // pred_check_branch
        %540 = sbr.rel (%p538) target = $region97
      $region96: #{tpu_custom_call.1} parent=5 // pred_region
        %s541 = ssub.s32 %s14, 2
        // Predicated region
        $region98: #{tpu_custom_call.1} parent=96 // pred_check
          %p542 = pneg %p172
        $region99: #{tpu_custom_call.1} parent=96 // pred_check_branch
          %544 = sbr.rel (%p542) target = $region101
        $region100: #{tpu_custom_call.1} parent=96 // pred_region
          %s545 = sand.u32 %s157, 1
          %s546 = scalar_lea.sflag [#allocation5], %s545
          %s547 = sand.u32 %s157, 1
          %s548 = smul.addr %s547, 8
          %s549 = scalar_lea.vmem [#allocation4], %s548
          %550 = dma.done %s546, 128
        $region101: #{tpu_custom_call.1} parent=96 // pred_fallthru
          _
      $region97: #{tpu_custom_call.1} parent=5 // pred_fallthru
        _
    $region6: #{tpu_custom_call.1} parent=1 // loop_footer
      %s18 = sadd.s32 1, %s14
    $region7: #{tpu_custom_call.1} parent=1 // loop_footer_branch
      %13 = sbr.rel target = $region3
    $region8: #{tpu_custom_call.1} parent=1 // loop_exit
      _
    %551 = vsyncpa [#allocation5], 1
    %s552 = scalar_lea.sflag [#allocation5], 1
    %553 = vsyncpa %s552, 1

</llo_original>
